<compile_context>
chip_gen: v7x
topology: tpu7x:2x2x1
jax: 0.10.0
libtpu: 0.0.40
codegen_flags: <defaults>
</compile_context>

<pallas_src>
import functools

import jax
import jax.numpy as jnp
from jax.experimental import pallas as pl
from jax.experimental.pallas import tpu as pltpu

BN_EPS = 1e-5
LANES = 128


def _prediction_kernel(layer_specs, feat_dim, x_ref, w_ref, vec_ref, out_ref, latent_ref):
    """Full Prediction forward (encoder + decoder + softmax) in one VMEM-resident pass.

    layer_specs: static tuple of (bias_row, gamma_row, beta_row, has_bn) per layer.
    w_ref:   [n_layers, 128, 128] bf16, weights pre-transposed to [in, out], zero-padded.
    vec_ref: [n_rows, 128] f32, packed bias / gamma / beta rows, zero-padded lanes.
    """
    n_layers = len(layer_specs)
    depth = n_layers // 2

    h = x_ref[...].astype(jnp.float32)          # [num, 128], zero in padded lanes
    inv_n = 1.0 / h.shape[0]

    for li, (b_row, g_row, bt_row, has_bn) in enumerate(layer_specs):
        bias = vec_ref[b_row:b_row + 1, :]      # (1, 128), zero in padded lanes
        # bf16 MXU operands, f32 accumulation. Zero-padded weight rows/cols keep
        # the padded activation lanes exactly zero through every layer.
        h = jnp.dot(h.astype(jnp.bfloat16), w_ref[li],
                    preferred_element_type=jnp.float32) + bias

        if has_bn:
            # Single-pass training-mode BatchNorm (biased variance) fused with ReLU.
            g = vec_ref[g_row:g_row + 1, :]
            bt = vec_ref[bt_row:bt_row + 1, :]
            s = jnp.sum(h, axis=0, keepdims=True)
            ss = jnp.sum(h * h, axis=0, keepdims=True)
            mean = s * inv_n
            var = jnp.maximum(ss * inv_n - mean * mean, 0.0)   # clamp cancellation
            scale = g * jax.lax.rsqrt(var + BN_EPS)            # rsqrt -> EUP
            shift = bt - mean * scale
            h = jnp.maximum(h * scale + shift, 0.0)
            # gamma/beta are zero in padded lanes -> padded lanes stay exactly 0.

        if li == depth - 1:
            # End of encoder: emit (padded) latent with a full-lane store.
            latent_ref[...] = h.astype(latent_ref.dtype)

    # Softmax over the real feature lanes; mask padded lanes to -inf once.
    lane = jax.lax.broadcasted_iota(jnp.int32, h.shape, 1)
    h = jnp.where(lane < feat_dim, h, -jnp.inf)
    m = jnp.max(h, axis=1, keepdims=True)
    e = jnp.exp(h - m)
    denom = jnp.sum(e, axis=1, keepdims=True)
    out_ref[...] = (e * pl.reciprocal(denom, approx=True)).astype(out_ref.dtype)


def make_prediction_params(prediction_dim, key):
    """Synthetic params mirroring the PyTorch module.

    Returns:
      w_packed:    [2*depth, 128, 128] bf16 slab (one DMA). Layer li weight is
                   w_packed[li, :fin, :fout] = nn.Linear.weight.T (i.e. [in, out]).
      vec_packed:  [n_rows_pad, 128] f32 slab holding bias / gamma / beta rows.
      layer_specs: static tuple of (bias_row, gamma_row, beta_row, has_bn).
    """
    depth = len(prediction_dim) - 1
    w_slabs, vec_rows, layer_specs = [], [], []

    k = key

    def next_key():
        nonlocal k
        k, sub = jax.random.split(k)
        return sub

    def add_row(vals, fout):
        row = jnp.zeros((LANES,), jnp.float32).at[:fout].set(vals)
        vec_rows.append(row)
        return len(vec_rows) - 1

    def add_weight(w_t):  # w_t: [fin, fout] f32 (already transposed)
        fin, fout = w_t.shape
        slab = jnp.zeros((LANES, LANES), jnp.float32).at[:fin, :fout].set(w_t)
        w_slabs.append(slab)

    # Encoder: Linear(dim[i] -> dim[i+1]) + BatchNorm1d + ReLU
    enc = [(prediction_dim[i], prediction_dim[i + 1], True) for i in range(depth)]
    # Decoder: Linear(dim[i] -> dim[i-1]); BN+ReLU for all but the last; Softmax last.
    dec = [(prediction_dim[i], prediction_dim[i - 1], i > 1) for i in range(depth, 0, -1)]

    for fin, fout, has_bn in enc + dec:
        w = jax.random.normal(next_key(), (fout, fin), jnp.float32) * 0.1  # nn.Linear [out, in]
        b = jax.random.normal(next_key(), (fout,), jnp.float32) * 0.01
        add_weight(w.T)                                   # store as [in, out]
        b_row = add_row(b, fout)
        if has_bn:
            g_row = add_row(jnp.ones((fout,), jnp.float32), fout)
            bt_row = add_row(jnp.zeros((fout,), jnp.float32), fout)
        else:
            g_row, bt_row = -1, -1
        layer_specs.append((b_row, g_row, bt_row, has_bn))

    w_packed = jnp.stack(w_slabs, axis=0).astype(jnp.bfloat16)   # one bf16 slab

    n_rows = len(vec_rows)
    pad_rows = (-n_rows) % 8
    vec_rows += [jnp.zeros((LANES,), jnp.float32)] * pad_rows
    vec_packed = jnp.stack(vec_rows, axis=0)

    return w_packed, vec_packed, tuple(layer_specs)


def prediction_forward(x, w_packed, vec_packed, layer_specs, prediction_dim):
    """Runs the Prediction forward pass. Returns (output, latent)."""
    num, feat_dim = x.shape
    latent_dim = prediction_dim[-1]

    # Zero-pad activations to the full 128-lane width once, on the host.
    x_pad = jnp.zeros((num, LANES), jnp.float32).at[:, :feat_dim].set(x.astype(jnp.float32))

    kernel = functools.partial(_prediction_kernel, layer_specs, feat_dim)
    vmem = pl.BlockSpec(memory_space=pltpu.MemorySpace.VMEM)

    out_pad, latent_pad = pl.pallas_call(
        kernel,
        out_shape=(
            jax.ShapeDtypeStruct((num, LANES), jnp.float32),
            jax.ShapeDtypeStruct((num, LANES), jnp.float32),
        ),
        in_specs=[vmem, vmem, vmem],
        out_specs=(vmem, vmem),
    )(x_pad, w_packed, vec_packed)

    return out_pad[:, :feat_dim], latent_pad[:, :latent_dim]


def _reference_forward(x, w_packed, vec_packed, layer_specs, prediction_dim):
    """Pure-JAX reference mirroring the kernel math (bf16 MXU operands, f32 rest)."""
    num, feat_dim = x.shape
    latent_dim = prediction_dim[-1]
    depth = len(layer_specs) // 2

    h = jnp.zeros((num, LANES), jnp.float32).at[:, :feat_dim].set(x.astype(jnp.float32))
    latent = None
    for li, (b_row, g_row, bt_row, has_bn) in enumerate(layer_specs):
        bias = vec_packed[b_row][None, :]
        h = jnp.dot(h.astype(jnp.bfloat16), w_packed[li],
                    preferred_element_type=jnp.float32) + bias
        if has_bn:
            g = vec_packed[g_row][None, :]
            bt = vec_packed[bt_row][None, :]
            mean = jnp.mean(h, axis=0, keepdims=True)
            var = jnp.maximum(jnp.mean(h * h, axis=0, keepdims=True) - mean * mean, 0.0)
            scale = g * jax.lax.rsqrt(var + BN_EPS)
            shift = bt - mean * scale
            h = jnp.maximum(h * scale + shift, 0.0)
        if li == depth - 1:
            latent = h[:, :latent_dim]
    logits = h[:, :feat_dim]
    out = jax.nn.softmax(logits, axis=1)
    return out, latent


if __name__ == "__main__":
    # Small shapes consistent with the module: x is [num, feat_dim],
    # prediction_dim = [feat_dim, hidden, latent_dim].
    prediction_dim = [32, 16, 8]
    num = 8

    key = jax.random.PRNGKey(0)
    key_x, key_p = jax.random.split(key)
    x = jax.random.normal(key_x, (num, prediction_dim[0]), jnp.float32)
    w_packed, vec_packed, layer_specs = make_prediction_params(prediction_dim, key_p)

    output, latent = prediction_forward(x, w_packed, vec_packed, layer_specs, prediction_dim)
    jax.block_until_ready((output, latent))

    assert output.shape == (num, prediction_dim[0])
    assert latent.shape == (num, prediction_dim[-1])
    # Softmax rows should sum to ~1 (approx reciprocal -> slightly loose tolerance).
    assert bool(jnp.allclose(jnp.sum(output, axis=1), 1.0, atol=2e-3))

    # Check against a pure-JAX reference that mirrors the same bf16-MXU math.
    ref_out, ref_latent = _reference_forward(x, w_packed, vec_packed, layer_specs, prediction_dim)
    assert bool(jnp.allclose(output, ref_out, atol=2e-3, rtol=2e-3))
    assert bool(jnp.allclose(latent, ref_latent, atol=2e-3, rtol=2e-3))

    print("KERNEL_OK")
</pallas_src>

<mosaic_0001>
module attributes {stable_mosaic.version = 11 : i64} {
  func.func @_prediction_kernel(%arg0: memref<8x128xf32, #tpu.memory_space<vmem>>, %arg1: memref<4x128x128xbf16, #tpu.memory_space<vmem>>, %arg2: memref<16x128xf32, #tpu.memory_space<vmem>>, %arg3: memref<8x128xf32, #tpu.memory_space<vmem>>, %arg4: memref<8x128xf32, #tpu.memory_space<vmem>>) attributes {dimension_semantics = [], scalar_prefetch = 0 : i64, scratch_operands = 0 : i64, tpu.core_type = #tpu.core_type<tc>} {
    %c0 = arith.constant 0 : index
    %c0_0 = arith.constant 0 : index
    %0 = vector.load %arg0[%c0, %c0_0] : memref<8x128xf32, #tpu.memory_space<vmem>>, vector<8x128xf32>
    %c0_1 = arith.constant 0 : index
    %c0_2 = arith.constant 0 : index
    %1 = vector.load %arg2[%c0_1, %c0_2] : memref<16x128xf32, #tpu.memory_space<vmem>>, vector<1x128xf32>
    %2 = arith.truncf %0 : vector<8x128xf32> to vector<8x128xbf16>
    %c0_3 = arith.constant 0 : index
    %c0_4 = arith.constant 0 : index
    %c0_5 = arith.constant 0 : index
    %3 = vector.load %arg1[%c0_3, %c0_4, %c0_5] : memref<4x128x128xbf16, #tpu.memory_space<vmem>>, vector<1x128x128xbf16>
    %4 = vector.shape_cast %3 : vector<1x128x128xbf16> to vector<128x128xbf16>
    %cst = arith.constant dense<0.000000e+00> : vector<8x128xf32>
    %5 = tpu.matmul %2, %4, %cst {dimension_numbers = #tpu.dot_dimension_numbers<[1], [0], [0], [1], [0, 0, 1, 1], [], []>} : vector<8x128xbf16>, vector<128x128xbf16>, vector<8x128xf32> -> vector<8x128xf32>
    %6 = vector.broadcast %1 : vector<1x128xf32> to vector<8x128xf32>
    %7 = arith.addf %5, %6 : vector<8x128xf32>
    %c1 = arith.constant 1 : index
    %c0_6 = arith.constant 0 : index
    %8 = vector.load %arg2[%c1, %c0_6] : memref<16x128xf32, #tpu.memory_space<vmem>>, vector<1x128xf32>
    %c2 = arith.constant 2 : index
    %c0_7 = arith.constant 0 : index
    %9 = vector.load %arg2[%c2, %c0_7] : memref<16x128xf32, #tpu.memory_space<vmem>>, vector<1x128xf32>
    %cst_8 = arith.constant dense<0.000000e+00> : vector<128xf32>
    %10 = vector.multi_reduction <add>, %7, %cst_8 [0] : vector<8x128xf32> to vector<128xf32>
    %11 = vector.shape_cast %10 : vector<128xf32> to vector<1x128xf32>
    %12 = arith.mulf %7, %7 : vector<8x128xf32>
    %cst_9 = arith.constant dense<0.000000e+00> : vector<128xf32>
    %13 = vector.multi_reduction <add>, %12, %cst_9 [0] : vector<8x128xf32> to vector<128xf32>
    %14 = vector.shape_cast %13 : vector<128xf32> to vector<1x128xf32>
    %cst_10 = arith.constant 1.250000e-01 : f32
    %15 = vector.broadcast %cst_10 : f32 to vector<1x128xf32>
    %16 = arith.mulf %11, %15 : vector<1x128xf32>
    %cst_11 = arith.constant 1.250000e-01 : f32
    %17 = vector.broadcast %cst_11 : f32 to vector<1x128xf32>
    %18 = arith.mulf %14, %17 : vector<1x128xf32>
    %19 = arith.mulf %16, %16 : vector<1x128xf32>
    %20 = arith.subf %18, %19 : vector<1x128xf32>
    %cst_12 = arith.constant 0.000000e+00 : f32
    %21 = vector.broadcast %cst_12 : f32 to vector<1x128xf32>
    %22 = arith.maximumf %20, %21 : vector<1x128xf32>
    %cst_13 = arith.constant 9.99999974E-6 : f32
    %23 = vector.broadcast %cst_13 : f32 to vector<1x128xf32>
    %24 = arith.addf %22, %23 : vector<1x128xf32>
    %25 = math.rsqrt %24 : vector<1x128xf32>
    %26 = arith.mulf %8, %25 : vector<1x128xf32>
    %27 = arith.mulf %16, %26 : vector<1x128xf32>
    %28 = arith.subf %9, %27 : vector<1x128xf32>
    %29 = vector.broadcast %26 : vector<1x128xf32> to vector<8x128xf32>
    %30 = arith.mulf %7, %29 : vector<8x128xf32>
    %31 = vector.broadcast %28 : vector<1x128xf32> to vector<8x128xf32>
    %32 = arith.addf %30, %31 : vector<8x128xf32>
    %cst_14 = arith.constant 0.000000e+00 : f32
    %33 = vector.broadcast %cst_14 : f32 to vector<8x128xf32>
    %34 = arith.maximumf %32, %33 : vector<8x128xf32>
    %c3 = arith.constant 3 : index
    %c0_15 = arith.constant 0 : index
    %35 = vector.load %arg2[%c3, %c0_15] : memref<16x128xf32, #tpu.memory_space<vmem>>, vector<1x128xf32>
    %36 = arith.truncf %34 : vector<8x128xf32> to vector<8x128xbf16>
    %c1_16 = arith.constant 1 : index
    %c0_17 = arith.constant 0 : index
    %c0_18 = arith.constant 0 : index
    %37 = vector.load %arg1[%c1_16, %c0_17, %c0_18] : memref<4x128x128xbf16, #tpu.memory_space<vmem>>, vector<1x128x128xbf16>
    %38 = vector.shape_cast %37 : vector<1x128x128xbf16> to vector<128x128xbf16>
    %cst_19 = arith.constant dense<0.000000e+00> : vector<8x128xf32>
    %39 = tpu.matmul %36, %38, %cst_19 {dimension_numbers = #tpu.dot_dimension_numbers<[1], [0], [0], [1], [0, 0, 1, 1], [], []>} : vector<8x128xbf16>, vector<128x128xbf16>, vector<8x128xf32> -> vector<8x128xf32>
    %40 = vector.broadcast %35 : vector<1x128xf32> to vector<8x128xf32>
    %41 = arith.addf %39, %40 : vector<8x128xf32>
    %c4 = arith.constant 4 : index
    %c0_20 = arith.constant 0 : index
    %42 = vector.load %arg2[%c4, %c0_20] : memref<16x128xf32, #tpu.memory_space<vmem>>, vector<1x128xf32>
    %c5 = arith.constant 5 : index
    %c0_21 = arith.constant 0 : index
    %43 = vector.load %arg2[%c5, %c0_21] : memref<16x128xf32, #tpu.memory_space<vmem>>, vector<1x128xf32>
    %cst_22 = arith.constant dense<0.000000e+00> : vector<128xf32>
    %44 = vector.multi_reduction <add>, %41, %cst_22 [0] : vector<8x128xf32> to vector<128xf32>
    %45 = vector.shape_cast %44 : vector<128xf32> to vector<1x128xf32>
    %46 = arith.mulf %41, %41 : vector<8x128xf32>
    %cst_23 = arith.constant dense<0.000000e+00> : vector<128xf32>
    %47 = vector.multi_reduction <add>, %46, %cst_23 [0] : vector<8x128xf32> to vector<128xf32>
    %48 = vector.shape_cast %47 : vector<128xf32> to vector<1x128xf32>
    %cst_24 = arith.constant 1.250000e-01 : f32
    %49 = vector.broadcast %cst_24 : f32 to vector<1x128xf32>
    %50 = arith.mulf %45, %49 : vector<1x128xf32>
    %cst_25 = arith.constant 1.250000e-01 : f32
    %51 = vector.broadcast %cst_25 : f32 to vector<1x128xf32>
    %52 = arith.mulf %48, %51 : vector<1x128xf32>
    %53 = arith.mulf %50, %50 : vector<1x128xf32>
    %54 = arith.subf %52, %53 : vector<1x128xf32>
    %cst_26 = arith.constant 0.000000e+00 : f32
    %55 = vector.broadcast %cst_26 : f32 to vector<1x128xf32>
    %56 = arith.maximumf %54, %55 : vector<1x128xf32>
    %cst_27 = arith.constant 9.99999974E-6 : f32
    %57 = vector.broadcast %cst_27 : f32 to vector<1x128xf32>
    %58 = arith.addf %56, %57 : vector<1x128xf32>
    %59 = math.rsqrt %58 : vector<1x128xf32>
    %60 = arith.mulf %42, %59 : vector<1x128xf32>
    %61 = arith.mulf %50, %60 : vector<1x128xf32>
    %62 = arith.subf %43, %61 : vector<1x128xf32>
    %63 = vector.broadcast %60 : vector<1x128xf32> to vector<8x128xf32>
    %64 = arith.mulf %41, %63 : vector<8x128xf32>
    %65 = vector.broadcast %62 : vector<1x128xf32> to vector<8x128xf32>
    %66 = arith.addf %64, %65 : vector<8x128xf32>
    %cst_28 = arith.constant 0.000000e+00 : f32
    %67 = vector.broadcast %cst_28 : f32 to vector<8x128xf32>
    %68 = arith.maximumf %66, %67 : vector<8x128xf32>
    %c0_29 = arith.constant 0 : index
    %c0_30 = arith.constant 0 : index
    %69 = vector.load %arg4[%c0_29, %c0_30] : memref<8x128xf32, #tpu.memory_space<vmem>>, vector<8x128xf32>
    tpu.vector_store %arg4[%c0_29, %c0_30], %68 {strides = array<i32>} : memref<8x128xf32, #tpu.memory_space<vmem>>, vector<8x128xf32>,
    %c6 = arith.constant 6 : index
    %c0_31 = arith.constant 0 : index
    %70 = vector.load %arg2[%c6, %c0_31] : memref<16x128xf32, #tpu.memory_space<vmem>>, vector<1x128xf32>
    %71 = arith.truncf %68 : vector<8x128xf32> to vector<8x128xbf16>
    %c2_32 = arith.constant 2 : index
    %c0_33 = arith.constant 0 : index
    %c0_34 = arith.constant 0 : index
    %72 = vector.load %arg1[%c2_32, %c0_33, %c0_34] : memref<4x128x128xbf16, #tpu.memory_space<vmem>>, vector<1x128x128xbf16>
    %73 = vector.shape_cast %72 : vector<1x128x128xbf16> to vector<128x128xbf16>
    %cst_35 = arith.constant dense<0.000000e+00> : vector<8x128xf32>
    %74 = tpu.matmul %71, %73, %cst_35 {dimension_numbers = #tpu.dot_dimension_numbers<[1], [0], [0], [1], [0, 0, 1, 1], [], []>} : vector<8x128xbf16>, vector<128x128xbf16>, vector<8x128xf32> -> vector<8x128xf32>
    %75 = vector.broadcast %70 : vector<1x128xf32> to vector<8x128xf32>
    %76 = arith.addf %74, %75 : vector<8x128xf32>
    %c7 = arith.constant 7 : index
    %c0_36 = arith.constant 0 : index
    %77 = vector.load %arg2[%c7, %c0_36] : memref<16x128xf32, #tpu.memory_space<vmem>>, vector<1x128xf32>
    %c8 = arith.constant 8 : index
    %c0_37 = arith.constant 0 : index
    %78 = vector.load %arg2[%c8, %c0_37] : memref<16x128xf32, #tpu.memory_space<vmem>>, vector<1x128xf32>
    %cst_38 = arith.constant dense<0.000000e+00> : vector<128xf32>
    %79 = vector.multi_reduction <add>, %76, %cst_38 [0] : vector<8x128xf32> to vector<128xf32>
    %80 = vector.shape_cast %79 : vector<128xf32> to vector<1x128xf32>
    %81 = arith.mulf %76, %76 : vector<8x128xf32>
    %cst_39 = arith.constant dense<0.000000e+00> : vector<128xf32>
    %82 = vector.multi_reduction <add>, %81, %cst_39 [0] : vector<8x128xf32> to vector<128xf32>
    %83 = vector.shape_cast %82 : vector<128xf32> to vector<1x128xf32>
    %cst_40 = arith.constant 1.250000e-01 : f32
    %84 = vector.broadcast %cst_40 : f32 to vector<1x128xf32>
    %85 = arith.mulf %80, %84 : vector<1x128xf32>
    %cst_41 = arith.constant 1.250000e-01 : f32
    %86 = vector.broadcast %cst_41 : f32 to vector<1x128xf32>
    %87 = arith.mulf %83, %86 : vector<1x128xf32>
    %88 = arith.mulf %85, %85 : vector<1x128xf32>
    %89 = arith.subf %87, %88 : vector<1x128xf32>
    %cst_42 = arith.constant 0.000000e+00 : f32
    %90 = vector.broadcast %cst_42 : f32 to vector<1x128xf32>
    %91 = arith.maximumf %89, %90 : vector<1x128xf32>
    %cst_43 = arith.constant 9.99999974E-6 : f32
    %92 = vector.broadcast %cst_43 : f32 to vector<1x128xf32>
    %93 = arith.addf %91, %92 : vector<1x128xf32>
    %94 = math.rsqrt %93 : vector<1x128xf32>
    %95 = arith.mulf %77, %94 : vector<1x128xf32>
    %96 = arith.mulf %85, %95 : vector<1x128xf32>
    %97 = arith.subf %78, %96 : vector<1x128xf32>
    %98 = vector.broadcast %95 : vector<1x128xf32> to vector<8x128xf32>
    %99 = arith.mulf %76, %98 : vector<8x128xf32>
    %100 = vector.broadcast %97 : vector<1x128xf32> to vector<8x128xf32>
    %101 = arith.addf %99, %100 : vector<8x128xf32>
    %cst_44 = arith.constant 0.000000e+00 : f32
    %102 = vector.broadcast %cst_44 : f32 to vector<8x128xf32>
    %103 = arith.maximumf %101, %102 : vector<8x128xf32>
    %c9 = arith.constant 9 : index
    %c0_45 = arith.constant 0 : index
    %104 = vector.load %arg2[%c9, %c0_45] : memref<16x128xf32, #tpu.memory_space<vmem>>, vector<1x128xf32>
    %105 = arith.truncf %103 : vector<8x128xf32> to vector<8x128xbf16>
    %c3_46 = arith.constant 3 : index
    %c0_47 = arith.constant 0 : index
    %c0_48 = arith.constant 0 : index
    %106 = vector.load %arg1[%c3_46, %c0_47, %c0_48] : memref<4x128x128xbf16, #tpu.memory_space<vmem>>, vector<1x128x128xbf16>
    %107 = vector.shape_cast %106 : vector<1x128x128xbf16> to vector<128x128xbf16>
    %cst_49 = arith.constant dense<0.000000e+00> : vector<8x128xf32>
    %108 = tpu.matmul %105, %107, %cst_49 {dimension_numbers = #tpu.dot_dimension_numbers<[1], [0], [0], [1], [0, 0, 1, 1], [], []>} : vector<8x128xbf16>, vector<128x128xbf16>, vector<8x128xf32> -> vector<8x128xf32>
    %109 = vector.broadcast %104 : vector<1x128xf32> to vector<8x128xf32>
    %110 = arith.addf %108, %109 : vector<8x128xf32>
    %111 = tpu.iota {dimensions = array<i32: 1>} : vector<8x128xi32>
    %c32_i32 = arith.constant 32 : i32
    %112 = vector.broadcast %c32_i32 : i32 to vector<8x128xi32>
    %113 = arith.cmpi slt, %111, %112 : vector<8x128xi32>
    %cst_50 = arith.constant 0xFF800000 : f32
    %114 = vector.broadcast %cst_50 : f32 to vector<8x128xf32>
    %115 = arith.select %113, %110, %114 : vector<8x128xi1>, vector<8x128xf32>
    %cst_51 = arith.constant dense<0xFF800000> : vector<8xf32>
    %116 = vector.multi_reduction <maximumf>, %115, %cst_51 [1] : vector<8x128xf32> to vector<8xf32>
    %117 = vector.shape_cast %116 : vector<8xf32> to vector<8x1xf32>
    %118 = vector.broadcast %117 : vector<8x1xf32> to vector<8x128xf32>
    %119 = arith.subf %115, %118 : vector<8x128xf32>
    %120 = math.exp %119 : vector<8x128xf32>
    %cst_52 = arith.constant dense<0.000000e+00> : vector<8xf32>
    %121 = vector.multi_reduction <add>, %120, %cst_52 [1] : vector<8x128xf32> to vector<8xf32>
    %122 = vector.shape_cast %121 : vector<8xf32> to vector<8x1xf32>
    %123 = tpu.reciprocal %122 {approx = true} : vector<8x1xf32> -> vector<8x1xf32>
    %124 = vector.broadcast %123 : vector<8x1xf32> to vector<8x128xf32>
    %125 = arith.mulf %120, %124 : vector<8x128xf32>
    %c0_53 = arith.constant 0 : index
    %c0_54 = arith.constant 0 : index
    %126 = vector.load %arg3[%c0_53, %c0_54] : memref<8x128xf32, #tpu.memory_space<vmem>>, vector<8x128xf32>
    tpu.vector_store %arg3[%c0_53, %c0_54], %125 {strides = array<i32>} : memref<8x128xf32, #tpu.memory_space<vmem>>, vector<8x128xf32>,
    return
  }
}

</mosaic_0001>

<llo_original>
// kernel: tpu_custom_call.1
$region0: #{tpu_custom_call.1}
  #allocation0 [shape = 'u32[]', space=smem, size = 0x4, offset = 0x4, fixed_abs, tag = 'smem constant byte address 0x4 - core index']
  #allocation1 [shape = 'u32[144,128]{1,0:T(1,128)}', space=vmem, size = 0x12000, scoped, tag = 'internal scratch']
  %s0 = inlined_call_operand.hbm [shape: f32[8,128], index: 0, kind: input, shape index: {}]
  %s1 = inlined_call_operand.hbm [shape: bf16[4,128,128], index: 1, kind: input, shape index: {}]
  %s2 = inlined_call_operand.hbm [shape: f32[16,128], index: 2, kind: input, shape index: {}]
  %s3 = inlined_call_operand.hbm [shape: f32[8,128], index: 3, kind: output, shape index: {0}]
  %s4 = inlined_call_operand.hbm [shape: f32[8,128], index: 4, kind: output, shape index: {1}]
  %5 = xla_tuple %s3, %s4
  %s6 = sld [smem:[#allocation0]]
  $region42: #{tpu_custom_call.1} parent=0
    _
  %s8 = ssub.s32 1, %s6
  %s9 = scalar_select 0, %s8, %s6
  $region1: #{tpu_custom_call.1} parent=0
    #allocation2 [shape = 'u8[4096]{0}', space=vmem, size = 0x1000, scoped, tag = 'input window, operand 0, single buffered']
    #allocation3 [shape = 's32[1]{0}', space=sflag, size = 0x4, scoped, tag = 'scoped memory for tpu_custom_call.1']
    #allocation4 [shape = 's32[1]{0}', space=sflag, size = 0x4, scoped, tag = 'scoped memory for tpu_custom_call.1']
    #allocation5 [shape = 'u8[131072]{0}', space=vmem, size = 0x20000, scoped, tag = 'input window, operand 1, single buffered']
    #allocation6 [shape = 's32[1]{0}', space=sflag, size = 0x4, scoped, tag = 'scoped memory for tpu_custom_call.1']
    #allocation7 [shape = 'u8[8192]{0}', space=vmem, size = 0x2000, scoped, tag = 'input window, operand 2, single buffered']
    #allocation8 [shape = 'u8[4096]{0}', space=vmem, size = 0x1000, scoped, tag = 'output window, operand 0, single buffered']
    #allocation9 [shape = 'u8[4096]{0}', space=vmem, size = 0x1000, scoped, tag = 'output window, operand 1, single buffered']
    #allocation10 [shape = 's32[1]{0}', space=sflag, size = 0x4, scoped, tag = 'scoped memory for tpu_custom_call.1']
    %10 = vsyncpa [#allocation3], 0
    %11 = vsyncpa [#allocation6], 0
    %12 = vsyncpa [#allocation4], 0
    %13 = vsyncpa [#allocation10], 0
    // Predicated region
    $region2: #{tpu_custom_call.1} parent=1 // pred_check
      _
    $region3: #{tpu_custom_call.1} parent=1 // pred_check_branch
      %15 = sbr.rel (0) target = $region5
    $region4: #{tpu_custom_call.1} parent=1 // pred_region
      %s17 = ssub.s32 128, 128
      %18 = vsyncadd [#allocation3], %s17
      %s20 = sshll.u32 [#allocation2], 4
      %s21 = int_to_ptr.vmem [resolvable:$true] %s20
      %23 = dma.hbm_to_vmem [thread:$0]  %s0, 128, %s21, [#allocation3]
    $region5: #{tpu_custom_call.1} parent=1 // pred_fallthru
      _
    // Predicated region
    $region6: #{tpu_custom_call.1} parent=1 // pred_check
      _
    $region7: #{tpu_custom_call.1} parent=1 // pred_check_branch
      %25 = sbr.rel (0) target = $region9
    $region8: #{tpu_custom_call.1} parent=1 // pred_region
      %s27 = ssub.s32 4096, 4096
      %28 = vsyncadd [#allocation6], %s27
      %s29 = sshll.u32 [#allocation5], 4
      %s30 = int_to_ptr.vmem [resolvable:$true] %s29
      %35 = dma.hbm_to_vmem [thread:$0]  %s1, 4096, %s30, [#allocation6], 64, 64, 4
    $region9: #{tpu_custom_call.1} parent=1 // pred_fallthru
      _
    // Predicated region
    $region10: #{tpu_custom_call.1} parent=1 // pred_check
      _
    $region11: #{tpu_custom_call.1} parent=1 // pred_check_branch
      %37 = sbr.rel (0) target = $region13
    $region12: #{tpu_custom_call.1} parent=1 // pred_region
      %s39 = ssub.s32 256, 256
      %40 = vsyncadd [#allocation6], %s39
      %s41 = sshll.u32 [#allocation7], 4
      %s42 = int_to_ptr.vmem [resolvable:$true] %s41
      %47 = dma.hbm_to_vmem [thread:$0]  %s2, 256, %s42, [#allocation6], 128, 128, 8
    $region13: #{tpu_custom_call.1} parent=1 // pred_fallthru
      _
    // Predicated region
    $region14: #{tpu_custom_call.1} parent=1 // pred_check
      _
    $region15: #{tpu_custom_call.1} parent=1 // pred_check_branch
      %49 = sbr.rel (0) target = $region17
    $region16: #{tpu_custom_call.1} parent=1 // pred_region
      %50 = dma.done [#allocation3], 128
    $region17: #{tpu_custom_call.1} parent=1 // pred_fallthru
      _
    // Predicated region
    $region18: #{tpu_custom_call.1} parent=1 // pred_check
      _
    $region19: #{tpu_custom_call.1} parent=1 // pred_check_branch
      %52 = sbr.rel (0) target = $region21
    $region20: #{tpu_custom_call.1} parent=1 // pred_region
      %53 = dma.done [#allocation6], 4096
    $region21: #{tpu_custom_call.1} parent=1 // pred_fallthru
      _
    // Predicated region
    $region22: #{tpu_custom_call.1} parent=1 // pred_check
      _
    $region23: #{tpu_custom_call.1} parent=1 // pred_check_branch
      %55 = sbr.rel (0) target = $region25
    $region24: #{tpu_custom_call.1} parent=1 // pred_region
      %56 = dma.done [#allocation6], 256
    $region25: #{tpu_custom_call.1} parent=1 // pred_fallthru
      _
    %v58 = vld [vmem:[#allocation2] sm:$0xff]
    %v59 = vld [vmem:[#allocation7] sm:$0x1]
    %v60 = vpack.c.bf16 %v58, %v58
    %v61 = vld [vmem:[#allocation5] sm:$0xf]
    %v62 = vld [vmem:[#allocation5 + $0x4] sm:$0xf]
    %v63 = vld [vmem:[#allocation5 + $0x8] sm:$0xf]
    %v64 = vld [vmem:[#allocation5 + $0xc] sm:$0xf]
    %v65 = vld [vmem:[#allocation5 + $0x10] sm:$0xf]
    %v66 = vld [vmem:[#allocation5 + $0x14] sm:$0xf]
    %v67 = vld [vmem:[#allocation5 + $0x18] sm:$0xf]
    %v68 = vld [vmem:[#allocation5 + $0x1c] sm:$0xf]
    %v69 = vld [vmem:[#allocation5 + $0x20] sm:$0xf]
    %v70 = vld [vmem:[#allocation5 + $0x24] sm:$0xf]
    %v71 = vld [vmem:[#allocation5 + $0x28] sm:$0xf]
    %v72 = vld [vmem:[#allocation5 + $0x2c] sm:$0xf]
    %v73 = vld [vmem:[#allocation5 + $0x30] sm:$0xf]
    %v74 = vld [vmem:[#allocation5 + $0x34] sm:$0xf]
    %v75 = vld [vmem:[#allocation5 + $0x38] sm:$0xf]
    %v76 = vld [vmem:[#allocation5 + $0x3c] sm:$0xf]
    %v77 = vlaneseq
    %v78 = vshrl.u32 %v77, 7
    %v79 = vsub.s32 0, %v78
    %v80 = vrot.slane %v59, %v79
    %v97 = vunpack.c.l.b16 %v61
    %v98 = vunpack.c.l.b16 %v62
    %v99 = vunpack.c.l.b16 %v63
    %v100 = vunpack.c.l.b16 %v64
    %v101 = vunpack.c.l.b16 %v65
    %v102 = vunpack.c.l.b16 %v66
    %v103 = vunpack.c.l.b16 %v67
    %v104 = vunpack.c.l.b16 %v68
    %v105 = vunpack.c.l.b16 %v69
    %v106 = vunpack.c.l.b16 %v70
    %v107 = vunpack.c.l.b16 %v71
    %v108 = vunpack.c.l.b16 %v72
    %v109 = vunpack.c.l.b16 %v73
    %v110 = vunpack.c.l.b16 %v74
    %v111 = vunpack.c.l.b16 %v75
    %v112 = vunpack.c.l.b16 %v76
    %v113 = vpack.c.b16 %v98, %v97
    %v114 = vpack.c.b16 %v100, %v99
    %v115 = vpack.c.b16 %v102, %v101
    %v116 = vpack.c.b16 %v104, %v103
    %v117 = vpack.c.b16 %v106, %v105
    %v118 = vpack.c.b16 %v108, %v107
    %v119 = vpack.c.b16 %v110, %v109
    %v120 = vpack.c.b16 %v112, %v111
    %129 = vmatprep.subr.bf16.mxu0 0
    %130 = vmatpush1.bf16.msra.mxu0 %v113
    %131 = vmatprep.subr.bf16.mxu0 0
    %132 = vmatpush1.bf16.msra.mxu0 %v114
    %133 = vmatprep.subr.bf16.mxu0 0
    %134 = vmatpush1.bf16.msra.mxu0 %v115
    %135 = vmatprep.subr.bf16.mxu0 0
    %136 = vmatpush1.bf16.msra.mxu0 %v116
    %137 = vmatprep.subr.bf16.mxu0 0
    %138 = vmatpush1.bf16.msra.mxu0 %v117
    %139 = vmatprep.subr.bf16.mxu0 0
    %140 = vmatpush1.bf16.msra.mxu0 %v118
    %141 = vmatprep.subr.bf16.mxu0 0
    %142 = vmatpush1.bf16.msra.mxu0 %v119
    %143 = vmatprep.subr.bf16.mxu0 0
    %144 = vmatpush1.bf16.msra.mxu0 %v120
    %145 = vmatprep.subr.bf16.mxu0 0
    %146 = vmatpush1.bf16.msra.mxu0 0
    %147 = vmatprep.subr.bf16.mxu0 0
    %148 = vmatpush1.bf16.msra.mxu0 0
    %149 = vmatprep.subr.bf16.mxu0 0
    %150 = vmatpush1.bf16.msra.mxu0 0
    %151 = vmatprep.subr.bf16.mxu0 0
    %152 = vmatpush1.bf16.msra.mxu0 0
    %153 = vmatprep.subr.bf16.mxu0 0
    %154 = vmatpush1.bf16.msra.mxu0 0
    %155 = vmatprep.subr.bf16.mxu0 0
    %156 = vmatpush1.bf16.msra.mxu0 0
    %157 = vmatprep.subr.bf16.mxu0 0
    %158 = vmatpush1.bf16.msra.mxu0 0
    %159 = vmatprep.subr.bf16.mxu0 0
    %160 = vmatpush1.bf16.msra.mxu0 0
    %161 = vmatprep.mubr.bf16.mxu0 0
    %162 = vmatmul.mubr.bf16.gmra.mrb[0].mxu0 %v60
    %v163 = vpop.f32.mrb[0].mxu0
    %v164 = vadd.f32 %v80, %v163
    %v165 = vpop.f32.mrb[0].mxu0
    %v166 = vpop.f32.mrb[0].mxu0
    %v167 = vpop.f32.mrb[0].mxu0
    %168 = vdwg.mxu0
    %v169 = vld [vmem:[#allocation7 + $0x1] sm:$0x1]
    %v170 = vld [vmem:[#allocation7 + $0x2] sm:$0x1]
    %v171 = vrot.slane %v164, 4
    %v172 = vadd.f32 %v164, %v171
    %v173 = vrot.slane %v172, 2
    %v174 = vadd.f32 %v172, %v173
    %v175 = vrot.slane %v174, 1
    %v176 = vadd.f32 %v174, %v175
    %v177 = vmul.f32 %v164, %v164
    %v178 = vrot.slane %v177, 4
    %v179 = vadd.f32 %v177, %v178
    %v180 = vrot.slane %v179, 2
    %v181 = vadd.f32 %v179, %v180
    %v182 = vrot.slane %v181, 1
    %v183 = vadd.f32 %v181, %v182
    %v184 = vmul.f32 %v176, 0.125
    %v185 = vmul.f32 %v183, 0.125
    %v186 = vmul.f32 %v184, %v184
    %v187 = vsub.f32 %v185, %v186
    %v188 = vmax.f32 %v187, 0.0
    %v189 = vadd.f32 %v188, 1e-05
    %v190 = vrsqrt.pop %v189
    %v191 = vmul.f32 %v169, %v190
    %v192 = vmul.f32 %v184, %v191
    %v193 = vsub.f32 %v170, %v192
    %v194 = vlaneseq
    %v195 = vshrl.u32 %v194, 7
    %v196 = vsub.s32 0, %v195
    %v197 = vrot.slane %v191, %v196
    %v198 = vmul.f32 %v164, %v197
    %v199 = vlaneseq
    %v200 = vshrl.u32 %v199, 7
    %v201 = vsub.s32 0, %v200
    %v202 = vrot.slane %v193, %v201
    %v203 = vadd.f32 %v198, %v202
    %v204 = vmax.f32 %v203, 0.0
    %v205 = vld [vmem:[#allocation7 + $0x3] sm:$0x1]
    %v206 = vpack.c.bf16 %v204, %v204
    %s207 = scalar_lea.vmem [#allocation5], 64
    %v208 = vld [vmem:[%s207] sm:$0xf]
    %v209 = vld [vmem:[%s207 + $0x4] sm:$0xf]
    %v210 = vld [vmem:[%s207 + $0x8] sm:$0xf]
    %v211 = vld [vmem:[%s207 + $0xc] sm:$0xf]
    %v212 = vld [vmem:[%s207 + $0x10] sm:$0xf]
    %v213 = vld [vmem:[%s207 + $0x14] sm:$0xf]
    %v214 = vld [vmem:[%s207 + $0x18] sm:$0xf]
    %v215 = vld [vmem:[%s207 + $0x1c] sm:$0xf]
    %v216 = vld [vmem:[%s207 + $0x20] sm:$0xf]
    %v217 = vld [vmem:[%s207 + $0x24] sm:$0xf]
    %v218 = vld [vmem:[%s207 + $0x28] sm:$0xf]
    %v219 = vld [vmem:[%s207 + $0x2c] sm:$0xf]
    %v220 = vld [vmem:[%s207 + $0x30] sm:$0xf]
    %v221 = vld [vmem:[%s207 + $0x34] sm:$0xf]
    %v222 = vld [vmem:[%s207 + $0x38] sm:$0xf]
    %v223 = vld [vmem:[%s207 + $0x3c] sm:$0xf]
    %v224 = vlaneseq
    %v225 = vshrl.u32 %v224, 7
    %v226 = vsub.s32 0, %v225
    %v227 = vrot.slane %v205, %v226
    %v244 = vunpack.c.l.b16 %v208
    %v245 = vunpack.c.l.b16 %v209
    %v246 = vunpack.c.l.b16 %v210
    %v247 = vunpack.c.l.b16 %v211
    %v248 = vunpack.c.l.b16 %v212
    %v249 = vunpack.c.l.b16 %v213
    %v250 = vunpack.c.l.b16 %v214
    %v251 = vunpack.c.l.b16 %v215
    %v252 = vunpack.c.l.b16 %v216
    %v253 = vunpack.c.l.b16 %v217
    %v254 = vunpack.c.l.b16 %v218
    %v255 = vunpack.c.l.b16 %v219
    %v256 = vunpack.c.l.b16 %v220
    %v257 = vunpack.c.l.b16 %v221
    %v258 = vunpack.c.l.b16 %v222
    %v259 = vunpack.c.l.b16 %v223
    %v260 = vpack.c.b16 %v245, %v244
    %v261 = vpack.c.b16 %v247, %v246
    %v262 = vpack.c.b16 %v249, %v248
    %v263 = vpack.c.b16 %v251, %v250
    %v264 = vpack.c.b16 %v253, %v252
    %v265 = vpack.c.b16 %v255, %v254
    %v266 = vpack.c.b16 %v257, %v256
    %v267 = vpack.c.b16 %v259, %v258
    %276 = vmatprep.subr.bf16.mxu0 0
    %277 = vmatpush1.bf16.msra.mxu0 %v260
    %278 = vmatprep.subr.bf16.mxu0 0
    %279 = vmatpush1.bf16.msra.mxu0 %v261
    %280 = vmatprep.subr.bf16.mxu0 0
    %281 = vmatpush1.bf16.msra.mxu0 %v262
    %282 = vmatprep.subr.bf16.mxu0 0
    %283 = vmatpush1.bf16.msra.mxu0 %v263
    %284 = vmatprep.subr.bf16.mxu0 0
    %285 = vmatpush1.bf16.msra.mxu0 %v264
    %286 = vmatprep.subr.bf16.mxu0 0
    %287 = vmatpush1.bf16.msra.mxu0 %v265
    %288 = vmatprep.subr.bf16.mxu0 0
    %289 = vmatpush1.bf16.msra.mxu0 %v266
    %290 = vmatprep.subr.bf16.mxu0 0
    %291 = vmatpush1.bf16.msra.mxu0 %v267
    %292 = vmatprep.subr.bf16.mxu0 0
    %293 = vmatpush1.bf16.msra.mxu0 0
    %294 = vmatprep.subr.bf16.mxu0 0
    %295 = vmatpush1.bf16.msra.mxu0 0
    %296 = vmatprep.subr.bf16.mxu0 0
    %297 = vmatpush1.bf16.msra.mxu0 0
    %298 = vmatprep.subr.bf16.mxu0 0
    %299 = vmatpush1.bf16.msra.mxu0 0
    %300 = vmatprep.subr.bf16.mxu0 0
    %301 = vmatpush1.bf16.msra.mxu0 0
    %302 = vmatprep.subr.bf16.mxu0 0
    %303 = vmatpush1.bf16.msra.mxu0 0
    %304 = vmatprep.subr.bf16.mxu0 0
    %305 = vmatpush1.bf16.msra.mxu0 0
    %306 = vmatprep.subr.bf16.mxu0 0
    %307 = vmatpush1.bf16.msra.mxu0 0
    %308 = vmatprep.mubr.bf16.mxu0 0
    %309 = vmatmul.mubr.bf16.gmra.mrb[0].mxu0 %v206
    %v310 = vpop.f32.mrb[0].mxu0
    %v311 = vadd.f32 %v227, %v310
    %v312 = vpop.f32.mrb[0].mxu0
    %v313 = vpop.f32.mrb[0].mxu0
    %v314 = vpop.f32.mrb[0].mxu0
    %315 = vdwg.mxu0
    %v316 = vld [vmem:[#allocation7 + $0x4] sm:$0x1]
    %v317 = vld [vmem:[#allocation7 + $0x5] sm:$0x1]
    %v318 = vrot.slane %v311, 4
    %v319 = vadd.f32 %v311, %v318
    %v320 = vrot.slane %v319, 2
    %v321 = vadd.f32 %v319, %v320
    %v322 = vrot.slane %v321, 1
    %v323 = vadd.f32 %v321, %v322
    %v324 = vmul.f32 %v311, %v311
    %v325 = vrot.slane %v324, 4
    %v326 = vadd.f32 %v324, %v325
    %v327 = vrot.slane %v326, 2
    %v328 = vadd.f32 %v326, %v327
    %v329 = vrot.slane %v328, 1
    %v330 = vadd.f32 %v328, %v329
    %v331 = vmul.f32 %v323, 0.125
    %v332 = vmul.f32 %v330, 0.125
    %v333 = vmul.f32 %v331, %v331
    %v334 = vsub.f32 %v332, %v333
    %v335 = vmax.f32 %v334, 0.0
    %v336 = vadd.f32 %v335, 1e-05
    %v337 = vrsqrt.pop %v336
    %v338 = vmul.f32 %v316, %v337
    %v339 = vmul.f32 %v331, %v338
    %v340 = vsub.f32 %v317, %v339
    %v341 = vlaneseq
    %v342 = vshrl.u32 %v341, 7
    %v343 = vsub.s32 0, %v342
    %v344 = vrot.slane %v338, %v343
    %v345 = vmul.f32 %v311, %v344
    %v346 = vlaneseq
    %v347 = vshrl.u32 %v346, 7
    %v348 = vsub.s32 0, %v347
    %v349 = vrot.slane %v340, %v348
    %v350 = vadd.f32 %v345, %v349
    %v351 = vmax.f32 %v350, 0.0
    %352 = vst [vmem:[#allocation9] sm:$0xff] %v351
    %v353 = vld [vmem:[#allocation7 + $0x6] sm:$0x1]
    %v354 = vpack.c.bf16 %v351, %v351
    %s355 = scalar_lea.vmem [#allocation5], 128
    %v356 = vld [vmem:[%s355] sm:$0xf]
    %v357 = vld [vmem:[%s355 + $0x4] sm:$0xf]
    %v358 = vld [vmem:[%s355 + $0x8] sm:$0xf]
    %v359 = vld [vmem:[%s355 + $0xc] sm:$0xf]
    %v360 = vld [vmem:[%s355 + $0x10] sm:$0xf]
    %v361 = vld [vmem:[%s355 + $0x14] sm:$0xf]
    %v362 = vld [vmem:[%s355 + $0x18] sm:$0xf]
    %v363 = vld [vmem:[%s355 + $0x1c] sm:$0xf]
    %v364 = vld [vmem:[%s355 + $0x20] sm:$0xf]
    %v365 = vld [vmem:[%s355 + $0x24] sm:$0xf]
    %v366 = vld [vmem:[%s355 + $0x28] sm:$0xf]
    %v367 = vld [vmem:[%s355 + $0x2c] sm:$0xf]
    %v368 = vld [vmem:[%s355 + $0x30] sm:$0xf]
    %v369 = vld [vmem:[%s355 + $0x34] sm:$0xf]
    %v370 = vld [vmem:[%s355 + $0x38] sm:$0xf]
    %v371 = vld [vmem:[%s355 + $0x3c] sm:$0xf]
    %v372 = vlaneseq
    %v373 = vshrl.u32 %v372, 7
    %v374 = vsub.s32 0, %v373
    %v375 = vrot.slane %v353, %v374
    %v392 = vunpack.c.l.b16 %v356
    %v393 = vunpack.c.l.b16 %v357
    %v394 = vunpack.c.l.b16 %v358
    %v395 = vunpack.c.l.b16 %v359
    %v396 = vunpack.c.l.b16 %v360
    %v397 = vunpack.c.l.b16 %v361
    %v398 = vunpack.c.l.b16 %v362
    %v399 = vunpack.c.l.b16 %v363
    %v400 = vunpack.c.l.b16 %v364
    %v401 = vunpack.c.l.b16 %v365
    %v402 = vunpack.c.l.b16 %v366
    %v403 = vunpack.c.l.b16 %v367
    %v404 = vunpack.c.l.b16 %v368
    %v405 = vunpack.c.l.b16 %v369
    %v406 = vunpack.c.l.b16 %v370
    %v407 = vunpack.c.l.b16 %v371
    %v408 = vpack.c.b16 %v393, %v392
    %v409 = vpack.c.b16 %v395, %v394
    %v410 = vpack.c.b16 %v397, %v396
    %v411 = vpack.c.b16 %v399, %v398
    %v412 = vpack.c.b16 %v401, %v400
    %v413 = vpack.c.b16 %v403, %v402
    %v414 = vpack.c.b16 %v405, %v404
    %v415 = vpack.c.b16 %v407, %v406
    %424 = vmatprep.subr.bf16.mxu0 0
    %425 = vmatpush1.bf16.msra.mxu0 %v408
    %426 = vmatprep.subr.bf16.mxu0 0
    %427 = vmatpush1.bf16.msra.mxu0 %v409
    %428 = vmatprep.subr.bf16.mxu0 0
    %429 = vmatpush1.bf16.msra.mxu0 %v410
    %430 = vmatprep.subr.bf16.mxu0 0
    %431 = vmatpush1.bf16.msra.mxu0 %v411
    %432 = vmatprep.subr.bf16.mxu0 0
    %433 = vmatpush1.bf16.msra.mxu0 %v412
    %434 = vmatprep.subr.bf16.mxu0 0
    %435 = vmatpush1.bf16.msra.mxu0 %v413
    %436 = vmatprep.subr.bf16.mxu0 0
    %437 = vmatpush1.bf16.msra.mxu0 %v414
    %438 = vmatprep.subr.bf16.mxu0 0
    %439 = vmatpush1.bf16.msra.mxu0 %v415
    %440 = vmatprep.subr.bf16.mxu0 0
    %441 = vmatpush1.bf16.msra.mxu0 0
    %442 = vmatprep.subr.bf16.mxu0 0
    %443 = vmatpush1.bf16.msra.mxu0 0
    %444 = vmatprep.subr.bf16.mxu0 0
    %445 = vmatpush1.bf16.msra.mxu0 0
    %446 = vmatprep.subr.bf16.mxu0 0
    %447 = vmatpush1.bf16.msra.mxu0 0
    %448 = vmatprep.subr.bf16.mxu0 0
    %449 = vmatpush1.bf16.msra.mxu0 0
    %450 = vmatprep.subr.bf16.mxu0 0
    %451 = vmatpush1.bf16.msra.mxu0 0
    %452 = vmatprep.subr.bf16.mxu0 0
    %453 = vmatpush1.bf16.msra.mxu0 0
    %454 = vmatprep.subr.bf16.mxu0 0
    %455 = vmatpush1.bf16.msra.mxu0 0
    %456 = vmatprep.mubr.bf16.mxu0 0
    %457 = vmatmul.mubr.bf16.gmra.mrb[0].mxu0 %v354
    %v458 = vpop.f32.mrb[0].mxu0
    %v459 = vadd.f32 %v375, %v458
    %v460 = vpop.f32.mrb[0].mxu0
    %v461 = vpop.f32.mrb[0].mxu0
    %v462 = vpop.f32.mrb[0].mxu0
    %463 = vdwg.mxu0
    %v464 = vld [vmem:[#allocation7 + $0x7] sm:$0x1]
    %v465 = vld [vmem:[#allocation7 + $0x8] sm:$0x1]
    %v466 = vrot.slane %v459, 4
    %v467 = vadd.f32 %v459, %v466
    %v468 = vrot.slane %v467, 2
    %v469 = vadd.f32 %v467, %v468
    %v470 = vrot.slane %v469, 1
    %v471 = vadd.f32 %v469, %v470
    %v472 = vmul.f32 %v459, %v459
    %v473 = vrot.slane %v472, 4
    %v474 = vadd.f32 %v472, %v473
    %v475 = vrot.slane %v474, 2
    %v476 = vadd.f32 %v474, %v475
    %v477 = vrot.slane %v476, 1
    %v478 = vadd.f32 %v476, %v477
    %v479 = vmul.f32 %v471, 0.125
    %v480 = vmul.f32 %v478, 0.125
    %v481 = vmul.f32 %v479, %v479
    %v482 = vsub.f32 %v480, %v481
    %v483 = vmax.f32 %v482, 0.0
    %v484 = vadd.f32 %v483, 1e-05
    %v485 = vrsqrt.pop %v484
    %v486 = vmul.f32 %v464, %v485
    %v487 = vmul.f32 %v479, %v486
    %v488 = vsub.f32 %v465, %v487
    %v489 = vlaneseq
    %v490 = vshrl.u32 %v489, 7
    %v491 = vsub.s32 0, %v490
    %v492 = vrot.slane %v486, %v491
    %v493 = vmul.f32 %v459, %v492
    %v494 = vlaneseq
    %v495 = vshrl.u32 %v494, 7
    %v496 = vsub.s32 0, %v495
    %v497 = vrot.slane %v488, %v496
    %v498 = vadd.f32 %v493, %v497
    %v499 = vmax.f32 %v498, 0.0
    %v500 = vld [vmem:[#allocation7 + $0x9] sm:$0x1]
    %v501 = vpack.c.bf16 %v499, %v499
    %s502 = scalar_lea.vmem [#allocation5], 192
    %v503 = vld [vmem:[%s502] sm:$0xf]
    %v504 = vld [vmem:[%s502 + $0x4] sm:$0xf]
    %v505 = vld [vmem:[%s502 + $0x8] sm:$0xf]
    %v506 = vld [vmem:[%s502 + $0xc] sm:$0xf]
    %v507 = vld [vmem:[%s502 + $0x10] sm:$0xf]
    %v508 = vld [vmem:[%s502 + $0x14] sm:$0xf]
    %v509 = vld [vmem:[%s502 + $0x18] sm:$0xf]
    %v510 = vld [vmem:[%s502 + $0x1c] sm:$0xf]
    %v511 = vld [vmem:[%s502 + $0x20] sm:$0xf]
    %v512 = vld [vmem:[%s502 + $0x24] sm:$0xf]
    %v513 = vld [vmem:[%s502 + $0x28] sm:$0xf]
    %v514 = vld [vmem:[%s502 + $0x2c] sm:$0xf]
    %v515 = vld [vmem:[%s502 + $0x30] sm:$0xf]
    %v516 = vld [vmem:[%s502 + $0x34] sm:$0xf]
    %v517 = vld [vmem:[%s502 + $0x38] sm:$0xf]
    %v518 = vld [vmem:[%s502 + $0x3c] sm:$0xf]
    %v519 = vlaneseq
    %v520 = vshrl.u32 %v519, 7
    %v521 = vsub.s32 0, %v520
    %v522 = vrot.slane %v500, %v521
    %v539 = vunpack.c.l.b16 %v503
    %v540 = vunpack.c.l.b16 %v504
    %v541 = vunpack.c.l.b16 %v505
    %v542 = vunpack.c.l.b16 %v506
    %v543 = vunpack.c.l.b16 %v507
    %v544 = vunpack.c.l.b16 %v508
    %v545 = vunpack.c.l.b16 %v509
    %v546 = vunpack.c.l.b16 %v510
    %v547 = vunpack.c.l.b16 %v511
    %v548 = vunpack.c.l.b16 %v512
    %v549 = vunpack.c.l.b16 %v513
    %v550 = vunpack.c.l.b16 %v514
    %v551 = vunpack.c.l.b16 %v515
    %v552 = vunpack.c.l.b16 %v516
    %v553 = vunpack.c.l.b16 %v517
    %v554 = vunpack.c.l.b16 %v518
    %v555 = vpack.c.b16 %v540, %v539
    %v556 = vpack.c.b16 %v542, %v541
    %v557 = vpack.c.b16 %v544, %v543
    %v558 = vpack.c.b16 %v546, %v545
    %v559 = vpack.c.b16 %v548, %v547
    %v560 = vpack.c.b16 %v550, %v549
    %v561 = vpack.c.b16 %v552, %v551
    %v562 = vpack.c.b16 %v554, %v553
    %571 = vmatprep.subr.bf16.mxu0 0
    %572 = vmatpush1.bf16.msra.mxu0 %v555
    %573 = vmatprep.subr.bf16.mxu0 0
    %574 = vmatpush1.bf16.msra.mxu0 %v556
    %575 = vmatprep.subr.bf16.mxu0 0
    %576 = vmatpush1.bf16.msra.mxu0 %v557
    %577 = vmatprep.subr.bf16.mxu0 0
    %578 = vmatpush1.bf16.msra.mxu0 %v558
    %579 = vmatprep.subr.bf16.mxu0 0
    %580 = vmatpush1.bf16.msra.mxu0 %v559
    %581 = vmatprep.subr.bf16.mxu0 0
    %582 = vmatpush1.bf16.msra.mxu0 %v560
    %583 = vmatprep.subr.bf16.mxu0 0
    %584 = vmatpush1.bf16.msra.mxu0 %v561
    %585 = vmatprep.subr.bf16.mxu0 0
    %586 = vmatpush1.bf16.msra.mxu0 %v562
    %587 = vmatprep.subr.bf16.mxu0 0
    %588 = vmatpush1.bf16.msra.mxu0 0
    %589 = vmatprep.subr.bf16.mxu0 0
    %590 = vmatpush1.bf16.msra.mxu0 0
    %591 = vmatprep.subr.bf16.mxu0 0
    %592 = vmatpush1.bf16.msra.mxu0 0
    %593 = vmatprep.subr.bf16.mxu0 0
    %594 = vmatpush1.bf16.msra.mxu0 0
    %595 = vmatprep.subr.bf16.mxu0 0
    %596 = vmatpush1.bf16.msra.mxu0 0
    %597 = vmatprep.subr.bf16.mxu0 0
    %598 = vmatpush1.bf16.msra.mxu0 0
    %599 = vmatprep.subr.bf16.mxu0 0
    %600 = vmatpush1.bf16.msra.mxu0 0
    %601 = vmatprep.subr.bf16.mxu0 0
    %602 = vmatpush1.bf16.msra.mxu0 0
    %603 = vmatprep.mubr.bf16.mxu0 0
    %604 = vmatmul.mubr.bf16.gmra.mrb[0].mxu0 %v501
    %v605 = vpop.f32.mrb[0].mxu0
    %v606 = vadd.f32 %v522, %v605
    %v607 = vpop.f32.mrb[0].mxu0
    %v608 = vpop.f32.mrb[0].mxu0
    %v609 = vpop.f32.mrb[0].mxu0
    %610 = vdwg.mxu0
    %v611 = vlaneseq
    %v612 = vand.u32 %v611, 127
    %vm613 = vcmp.lt.s32.totalorder %v612, 32
    %v614 = vsel %vm613, %v606, -inf
    %615 = vmax.xlane.f32.xlu0 %v614
    %v616 = vpop.xlane.xlu0 %615
    %v617 = vsub.f32 %v614, %v616
    %v618 = vmul.f32 %v617, 1.442695
    %v619 = vpow.pop %v618
    %620 = vadd.xlane.f32.xlu0 %v619
    %v621 = vpop.xlane.xlu0 %620
    %v622 = vrcp.pop %v621
    %v623 = vmul.f32 %v619, %v622
    %624 = vst [vmem:[#allocation8] sm:$0xff] %v623
    // Predicated region
    $region26: #{tpu_custom_call.1} parent=1 // pred_check
      _
    $region27: #{tpu_custom_call.1} parent=1 // pred_check_branch
      %626 = sbr.rel (0) target = $region29
    $region28: #{tpu_custom_call.1} parent=1 // pred_region
      %s628 = ssub.s32 128, 128
      %629 = vsyncadd [#allocation4], %s628
      %s631 = sshll.u32 [#allocation8], 4
      %s632 = int_to_ptr.vmem [resolvable:$true] %s631
      %634 = dma.vmem_to_hbm [thread:$0]  %s632, 128, %s3, [#allocation4]
    $region29: #{tpu_custom_call.1} parent=1 // pred_fallthru
      _
    // Predicated region
    $region30: #{tpu_custom_call.1} parent=1 // pred_check
      _
    $region31: #{tpu_custom_call.1} parent=1 // pred_check_branch
      %636 = sbr.rel (0) target = $region33
    $region32: #{tpu_custom_call.1} parent=1 // pred_region
      %s638 = ssub.s32 128, 128
      %639 = vsyncadd [#allocation10], %s638
      %s641 = sshll.u32 [#allocation9], 4
      %s642 = int_to_ptr.vmem [resolvable:$true] %s641
      %644 = dma.vmem_to_hbm [thread:$0]  %s642, 128, %s4, [#allocation10]
    $region33: #{tpu_custom_call.1} parent=1 // pred_fallthru
      _
    // Predicated region
    $region34: #{tpu_custom_call.1} parent=1 // pred_check
      _
    $region35: #{tpu_custom_call.1} parent=1 // pred_check_branch
      %646 = sbr.rel (0) target = $region37
    $region36: #{tpu_custom_call.1} parent=1 // pred_region
      %647 = dma.done [#allocation4], 128
    $region37: #{tpu_custom_call.1} parent=1 // pred_fallthru
      _
    // Predicated region
    $region38: #{tpu_custom_call.1} parent=1 // pred_check
      _
    $region39: #{tpu_custom_call.1} parent=1 // pred_check_branch
      %649 = sbr.rel (0) target = $region41
    $region40: #{tpu_custom_call.1} parent=1 // pred_region
      %650 = dma.done [#allocation10], 128
    $region41: #{tpu_custom_call.1} parent=1 // pred_fallthru
      _
    %651 = vsyncpa [#allocation3], 1
    %652 = vsyncpa [#allocation6], 1
    %653 = vsyncpa [#allocation4], 1
    %654 = vsyncpa [#allocation10], 1

</llo_original>
